<compile_context>
chip_gen: v7x
topology: tpu7x:2x2x1
jax: 0.10.0
libtpu: 0.0.40
codegen_flags: <defaults>
</compile_context>

<pallas_src>
import functools

import jax
import jax.numpy as jnp
from jax.experimental import pallas as pl
from jax.experimental.pallas import tpu as pltpu


# ---------------------------------------------------------------------------
# Kernels (all operate on lane-dense 2-D tiles; contraction dim K kept whole)
# ---------------------------------------------------------------------------

def _matmul_kernel(a_ref, x_ref, o_ref):
    # o = A @ X              A: (M, K) resident, X: (K, tL), o: (M, tL)
    o_ref[...] = jnp.dot(a_ref[...], x_ref[...],
                         preferred_element_type=jnp.float32).astype(o_ref.dtype)


def _prop_kernel(a_ref, x0_ref, h_ref, o_ref, *, alpha):
    # o = alpha * x0 + (1 - alpha) * (A @ h)     (fused mix-hop step, V == W)
    ah = jnp.dot(a_ref[...], h_ref[...], preferred_element_type=jnp.float32)
    o_ref[...] = (alpha * x0_ref[...].astype(jnp.float32)
                  + (1.0 - alpha) * ah).astype(o_ref.dtype)


def _mlp_kernel(w_ref, b_ref, x_ref, o_ref):
    # o = W @ X + b          1x1 conv over channels, bias broadcast along lanes
    acc = jnp.dot(w_ref[...], x_ref[...], preferred_element_type=jnp.float32)
    o_ref[...] = (acc + b_ref[...].astype(jnp.float32)).astype(o_ref.dtype)


# ---------------------------------------------------------------------------
# Lane-tiled pallas_call wrapper
# ---------------------------------------------------------------------------

_VMEM_LIMIT_BYTES = 32 * 1024 * 1024  # explicit, safe on v5e/v6e and v7x (64 MiB phys)


def _pick_lane_tile(n_lanes, rows_in_vmem, itemsize):
    """Largest lane tile (multiple of 128) that fits VMEM with double-buffering,
    preferring >= 2 grid steps so both v7x TensorCores get work."""
    cap = max(n_lanes // 2, 128)
    budget = 20 * 1024 * 1024  # headroom under the 32 MiB scoped limit
    for t in (512, 256, 128):
        if t <= cap and 2 * rows_in_vmem * t * itemsize <= budget:
            return t
    return 128


def _lane_tiled_call(kernel, resident_ops, lane_ops, out_rows, out_dtype):
    """Run `kernel(*resident_refs, *lane_refs, out_ref)` tiled along the shared
    lane (last) axis of `lane_ops`.  Resident operands get a constant index map
    (stay in VMEM across all grid steps)."""
    n_lanes = lane_ops[0].shape[1]
    for op in lane_ops:
        assert op.ndim == 2 and op.shape[1] == n_lanes

    itemsize = max(jnp.dtype(op.dtype).itemsize for op in lane_ops)
    rows_in_vmem = sum(op.shape[0] for op in lane_ops) + out_rows
    tl = _pick_lane_tile(n_lanes, rows_in_vmem, itemsize)

    n_pad = (-n_lanes) % tl
    if n_pad:
        lane_ops = [jnp.pad(op, ((0, 0), (0, n_pad))) for op in lane_ops]
    padded = n_lanes + n_pad
    grid = (padded // tl,)

    in_specs = (
        [pl.BlockSpec(tuple(op.shape), lambda j, nd=op.ndim: (0,) * nd)
         for op in resident_ops]
        + [pl.BlockSpec((op.shape[0], tl), lambda j: (0, j)) for op in lane_ops]
    )

    out = pl.pallas_call(
        kernel,
        out_shape=jax.ShapeDtypeStruct((out_rows, padded), out_dtype),
        grid_spec=pltpu.PrefetchScalarGridSpec(
            num_scalar_prefetch=0,
            grid=grid,
            in_specs=in_specs,
            out_specs=pl.BlockSpec((out_rows, tl), lambda j: (0, j)),
        ),
        compiler_params=pltpu.CompilerParams(
            dimension_semantics=("parallel",),
            vmem_limit_bytes=_VMEM_LIMIT_BYTES,
        ),
    )(*resident_ops, *lane_ops)

    return out[:, :n_lanes] if n_pad else out


# ---------------------------------------------------------------------------
# Module-level ops
# ---------------------------------------------------------------------------

def nconv(x, A, *, compute_dtype=None):
    """out[n,c,v,l] = sum_w A[v,w] * x[n,c,w,l]   (== torch.einsum('ncwl,vw->ncvl'))."""
    N, C, W, L = x.shape
    V, W2 = A.shape
    assert W == W2, f"contraction dim mismatch: x has W={W}, A has W={W2}"

    x_flat = jnp.moveaxis(x, 2, 0).reshape(W, N * C * L)   # (W, N*C*L) lane-dense
    a = A
    if compute_dtype is not None:
        a = a.astype(compute_dtype)
        x_flat = x_flat.astype(compute_dtype)

    out_flat = _lane_tiled_call(_matmul_kernel, [a], [x_flat], V, x.dtype)  # (V, N*C*L)
    return jnp.moveaxis(out_flat.reshape(V, N, C, L), 0, 2)                 # (N, C, V, L)


def mixprop_forward(x, adj, mlp_w, mlp_b, *, gdep, alpha, compute_dtype=None):
    """Full mixprop forward.
    x: (N, C, W, L), adj: (V, W) with V == W (square adjacency),
    mlp_w: (c_out, (gdep+1)*C), mlp_b: (c_out,) or None.
    Returns (N, c_out, V, L)."""
    N, C, W, L = x.shape
    V, W2 = adj.shape
    assert W == W2 and V == W, "mixprop expects a square adjacency matrix"
    c_out, c_in_tot = mlp_w.shape
    assert c_in_tot == (gdep + 1) * C

    out_dtype = x.dtype
    a = adj.astype(compute_dtype) if compute_dtype is not None else adj

    # ---- propagation: lane-dense (node, N*C*L) layout, fused alpha-mix kernel ----
    x_flat = jnp.moveaxis(x, 2, 0).reshape(W, N * C * L)
    x_flat_c = x_flat.astype(compute_dtype) if compute_dtype is not None else x_flat

    prop_kernel = functools.partial(_prop_kernel, alpha=float(alpha))

    outs = [x]
    h_flat = x_flat_c
    for _ in range(gdep):
        h_flat = _lane_tiled_call(prop_kernel, [a], [x_flat_c, h_flat], V, out_dtype)
        outs.append(jnp.moveaxis(h_flat.reshape(V, N, C, L), 0, 2))  # (N, C, V, L)
        if compute_dtype is not None:
            h_flat = h_flat.astype(compute_dtype)

    ho = jnp.concatenate(outs, axis=1)                # (N, (gdep+1)*C, V, L)

    # ---- 1x1 conv (pointwise linear over channels) as a second lane-dense matmul ----
    ho_flat = jnp.moveaxis(ho, 1, 0).reshape(c_in_tot, N * V * L)
    w = mlp_w
    b = (mlp_b if mlp_b is not None
         else jnp.zeros((c_out,), mlp_w.dtype)).reshape(c_out, 1)
    if compute_dtype is not None:
        w = w.astype(compute_dtype)
        ho_flat = ho_flat.astype(compute_dtype)

    y_flat = _lane_tiled_call(_mlp_kernel, [w, b], [ho_flat], c_out, out_dtype)
    return jnp.moveaxis(y_flat.reshape(c_out, N, V, L), 0, 1)   # (N, c_out, V, L)


# ---------------------------------------------------------------------------
# Test
# ---------------------------------------------------------------------------

if __name__ == "__main__":
    # Small shapes consistent with mixprop usage:
    #   batch N=2, c_in C=4, nodes W=V=16, seq length L=32, gdep=2, c_out=8.
    # N*C*L = 256 and N*V*L = 1024 -> lane tiles of 128/512 with 2 grid steps each.
    N, C, L = 2, 4, 32
    num_nodes = 16
    gdep, alpha = 2, 0.05
    c_out = 8

    key = jax.random.PRNGKey(0)
    kx, ka, kw, kb = jax.random.split(key, 4)
    x = jax.random.normal(kx, (N, C, num_nodes, L), dtype=jnp.float32)
    # adjacency-like magnitudes (row-sum ~ 1) keep the propagated values well scaled
    adj = jax.random.uniform(ka, (num_nodes, num_nodes), dtype=jnp.float32) / num_nodes
    mlp_w = jax.random.normal(kw, (c_out, (gdep + 1) * C), dtype=jnp.float32) * 0.1
    mlp_b = jax.random.normal(kb, (c_out,), dtype=jnp.float32) * 0.1

    # ---- Pallas forward (full mixprop) ----
    fwd = jax.jit(functools.partial(mixprop_forward, gdep=gdep, alpha=alpha))
    y = jax.block_until_ready(fwd(x, adj, mlp_w, mlp_b))

    # ---- standalone nconv check (the restructured inner op) ----
    nc = jax.block_until_ready(nconv(x, adj))
    nc_ref = jnp.einsum('ncwl,vw->ncvl', x, adj,
                        precision=jax.lax.Precision.HIGHEST)
    assert nc.shape == (N, C, num_nodes, L)
    assert jnp.allclose(nc, nc_ref, atol=1e-3, rtol=1e-3)

    # ---- full mixprop reference (pure JAX, same math as the torch module) ----
    h = x
    ref_outs = [h]
    for _ in range(gdep):
        h = alpha * x + (1.0 - alpha) * jnp.einsum(
            'ncwl,vw->ncvl', h, adj, precision=jax.lax.Precision.HIGHEST)
        ref_outs.append(h)
    ho_ref = jnp.concatenate(ref_outs, axis=1)
    y_ref = jnp.einsum('ncvl,oc->novl', ho_ref, mlp_w,
                       precision=jax.lax.Precision.HIGHEST) \
            + mlp_b[None, :, None, None]

    assert y.shape == (N, c_out, num_nodes, L)
    assert jnp.allclose(y, y_ref, atol=1e-3, rtol=1e-3)

    print("KERNEL_OK")
</pallas_src>

<mosaic_0001>
module attributes {stable_mosaic.version = 11 : i64} {
  func.func @_prop_kernel(%arg0: i32, %arg1: memref<16x16xf32, #tpu.memory_space<vmem>>, %arg2: memref<16x128xf32, #tpu.memory_space<vmem>>, %arg3: memref<16x128xf32, #tpu.memory_space<vmem>>, %arg4: memref<16x128xf32, #tpu.memory_space<vmem>>) attributes {dimension_semantics = [#tpu.dimension_semantics<parallel>], iteration_bounds = array<i64: 2>, scalar_prefetch = 0 : i64, scratch_operands = 0 : i64, tpu.core_type = #tpu.core_type<tc>, window_params = [{pipeline_mode = #tpu.pipeline_mode<synchronous>, transform_indices = @transform_0, window_bounds = array<i64: 16, 16>}, {transform_indices = @transform_1, window_bounds = array<i64: 16, 128>}, {transform_indices = @transform_2, window_bounds = array<i64: 16, 128>}, {transform_indices = @transform_3, window_bounds = array<i64: 16, 128>}]} {
    %c0 = arith.constant 0 : index
    %c0_0 = arith.constant 0 : index
    %0 = vector.load %arg1[%c0, %c0_0] : memref<16x16xf32, #tpu.memory_space<vmem>>, vector<16x16xf32>
    %c0_1 = arith.constant 0 : index
    %c0_2 = arith.constant 0 : index
    %1 = vector.load %arg3[%c0_1, %c0_2] : memref<16x128xf32, #tpu.memory_space<vmem>>, vector<16x128xf32>
    %cst = arith.constant dense<0.000000e+00> : vector<16x128xf32>
    %2 = tpu.matmul %0, %1, %cst {dimension_numbers = #tpu.dot_dimension_numbers<[1], [0], [0], [1], [0, 0, 1, 1], [], []>} : vector<16x16xf32>, vector<16x128xf32>, vector<16x128xf32> -> vector<16x128xf32>
    %c0_3 = arith.constant 0 : index
    %c0_4 = arith.constant 0 : index
    %3 = vector.load %arg2[%c0_3, %c0_4] : memref<16x128xf32, #tpu.memory_space<vmem>>, vector<16x128xf32>
    %cst_5 = arith.constant 5.000000e-02 : f32
    %4 = vector.broadcast %cst_5 : f32 to vector<16x128xf32>
    %5 = arith.mulf %4, %3 : vector<16x128xf32>
    %cst_6 = arith.constant 0.949999988 : f32
    %6 = vector.broadcast %cst_6 : f32 to vector<16x128xf32>
    %7 = arith.mulf %6, %2 : vector<16x128xf32>
    %8 = arith.addf %5, %7 : vector<16x128xf32>
    %c0_7 = arith.constant 0 : index
    %c0_8 = arith.constant 0 : index
    %9 = vector.load %arg4[%c0_7, %c0_8] : memref<16x128xf32, #tpu.memory_space<vmem>>, vector<16x128xf32>
    tpu.vector_store %arg4[%c0_7, %c0_8], %8 {strides = array<i32>} : memref<16x128xf32, #tpu.memory_space<vmem>>, vector<16x128xf32>,
    return
  }
  func.func @transform_0(%arg0: i32) -> (i32, i32) {
    %c0_i32 = arith.constant 0 : i32
    %c0_i32_0 = arith.constant 0 : i32
    %c0_i32_1 = arith.constant 0 : i32
    return %c0_i32, %c0_i32_0 : i32, i32
  }
  func.func @transform_1(%arg0: i32) -> (i32, i32) {
    %c0_i32 = arith.constant 0 : i32
    %c0_i32_0 = arith.constant 0 : i32
    return %c0_i32, %arg0 : i32, i32
  }
  func.func @transform_2(%arg0: i32) -> (i32, i32) {
    %c0_i32 = arith.constant 0 : i32
    %c0_i32_0 = arith.constant 0 : i32
    return %c0_i32, %arg0 : i32, i32
  }
  func.func @transform_3(%arg0: i32) -> (i32, i32) {
    %c0_i32 = arith.constant 0 : i32
    %c0_i32_0 = arith.constant 0 : i32
    return %c0_i32, %arg0 : i32, i32
  }
}

module attributes {stable_mosaic.version = 11 : i64} {
  func.func @_mlp_kernel(%arg0: i32, %arg1: memref<8x12xf32, #tpu.memory_space<vmem>>, %arg2: memref<8x1xf32, #tpu.memory_space<vmem>>, %arg3: memref<12x512xf32, #tpu.memory_space<vmem>>, %arg4: memref<8x512xf32, #tpu.memory_space<vmem>>) attributes {dimension_semantics = [#tpu.dimension_semantics<parallel>], iteration_bounds = array<i64: 2>, scalar_prefetch = 0 : i64, scratch_operands = 0 : i64, tpu.core_type = #tpu.core_type<tc>, window_params = [{pipeline_mode = #tpu.pipeline_mode<synchronous>, transform_indices = @transform_0, window_bounds = array<i64: 8, 12>}, {pipeline_mode = #tpu.pipeline_mode<synchronous>, transform_indices = @transform_1, window_bounds = array<i64: 8, 1>}, {transform_indices = @transform_2, window_bounds = array<i64: 12, 512>}, {transform_indices = @transform_3, window_bounds = array<i64: 8, 512>}]} {
    %c0 = arith.constant 0 : index
    %c0_0 = arith.constant 0 : index
    %0 = vector.load %arg1[%c0, %c0_0] : memref<8x12xf32, #tpu.memory_space<vmem>>, vector<8x12xf32>
    %c0_1 = arith.constant 0 : index
    %c0_2 = arith.constant 0 : index
    %1 = vector.load %arg3[%c0_1, %c0_2] : memref<12x512xf32, #tpu.memory_space<vmem>>, vector<12x512xf32>
    %cst = arith.constant dense<0.000000e+00> : vector<8x512xf32>
    %2 = tpu.matmul %0, %1, %cst {dimension_numbers = #tpu.dot_dimension_numbers<[1], [0], [0], [1], [0, 0, 1, 1], [], []>} : vector<8x12xf32>, vector<12x512xf32>, vector<8x512xf32> -> vector<8x512xf32>
    %c0_3 = arith.constant 0 : index
    %c0_4 = arith.constant 0 : index
    %3 = vector.load %arg2[%c0_3, %c0_4] : memref<8x1xf32, #tpu.memory_space<vmem>>, vector<8x1xf32>
    %4 = vector.broadcast %3 : vector<8x1xf32> to vector<8x512xf32>
    %5 = arith.addf %2, %4 : vector<8x512xf32>
    %c0_5 = arith.constant 0 : index
    %c0_6 = arith.constant 0 : index
    %6 = vector.load %arg4[%c0_5, %c0_6] : memref<8x512xf32, #tpu.memory_space<vmem>>, vector<8x512xf32>
    tpu.vector_store %arg4[%c0_5, %c0_6], %5 {strides = array<i32>} : memref<8x512xf32, #tpu.memory_space<vmem>>, vector<8x512xf32>,
    return
  }
  func.func @transform_0(%arg0: i32) -> (i32, i32) {
    %c0_i32 = arith.constant 0 : i32
    %c0_i32_0 = arith.constant 0 : i32
    %c0_i32_1 = arith.constant 0 : i32
    return %c0_i32, %c0_i32_0 : i32, i32
  }
  func.func @transform_1(%arg0: i32) -> (i32, i32) {
    %c0_i32 = arith.constant 0 : i32
    %c0_i32_0 = arith.constant 0 : i32
    %c0_i32_1 = arith.constant 0 : i32
    return %c0_i32, %c0_i32_0 : i32, i32
  }
  func.func @transform_2(%arg0: i32) -> (i32, i32) {
    %c0_i32 = arith.constant 0 : i32
    %c0_i32_0 = arith.constant 0 : i32
    return %c0_i32, %arg0 : i32, i32
  }
  func.func @transform_3(%arg0: i32) -> (i32, i32) {
    %c0_i32 = arith.constant 0 : i32
    %c0_i32_0 = arith.constant 0 : i32
    return %c0_i32, %arg0 : i32, i32
  }
}

</mosaic_0001>

<llo_original>
// kernel: mixprop_forward.3
$region0: #{mixprop_forward.3}
  #allocation0 [shape = 'u32[]', space=smem, size = 0x4, offset = 0x4, fixed_abs, tag = 'smem constant byte address 0x4 - core index']
  #allocation1 [shape = 'u32[144,128]{1,0:T(1,128)}', space=vmem, size = 0x12000, scoped, tag = 'internal scratch']
  %s0 = inlined_call_operand.vmem [shape: f32[16,16], index: 0, kind: input, shape index: {}]
  %s1 = inlined_call_operand.vmem [shape: f32[16,256], index: 1, kind: input, shape index: {}, may-alias: {1,2}]
  %s2 = inlined_call_operand.vmem [shape: f32[16,256], index: 2, kind: input, shape index: {}, may-alias: {1,2}]
  %s3 = inlined_call_operand.vmem [shape: f32[16,256], index: 3, kind: output, shape index: {}]
  %s4 = sld [smem:[#allocation0]]
  $region155: #{mixprop_forward.3} parent=0
    _
  %s6 = ssub.s32 1, %s4
  %s7 = scalar_select 0, %s6, %s4
  $region1: #{mixprop_forward.3} parent=0
    #allocation2 [shape = 'u8[16384]{0}', space=vmem, size = 0x4000, scoped, tag = 'input window, operand 1']
    #allocation3 [shape = 'u8[16384]{0}', space=vmem, size = 0x4000, scoped, tag = 'input window, operand 2']
    #allocation4 [shape = 'u8[16384]{0}', space=vmem, size = 0x4000, scoped, tag = 'output window, operand 0']
    loop: start=0, step=1, limit=4
    $region2: #{mixprop_forward.3} parent=1 // loop_pre_header
      _
    $region3: #{mixprop_forward.3} parent=1 // loop_header
      %s9 = sphi 0, %s13
      %p10 = scmp.ge.s32.totalorder %s9, 4
      %s17 = sphi 0, %s17
      %s19 = sphi 0, %s17
      %s20 = sphi 0, %s19
      %s34 = sphi 0, %s20
      %s40 = sphi 0, %s42
      %s43 = sphi 0, %s40
      %s44 = sphi 0, %s43
      %s60 = sphi 0, %s44
      %s66 = sphi 0, %s68
      %s69 = sphi 0, %s66
      %s70 = sphi 0, %s69
      %s86 = sphi 0, %s70
      %s92 = sphi 0, %s94
      %s95 = sphi 0, %s92
      %s96 = sphi 0, %s95
      %s112 = sphi 0, %s96
    $region4: #{mixprop_forward.3} parent=1 // loop_header_branch
      %12 = sbr.rel (%p10) target = $region8
    $region5: #{mixprop_forward.3} parent=1 // loop_body
      %s14 = ssub.s32 %s9, 1
      %s15 = ssub.s32 %s9, 2
      %s16 = sadd.s32 %s9, 1
      %s18 = sadd.s32 %s17, 1
      %p21 = scmp.eq.s32.totalorder %s9, 1
      %p22 = scmp.ne.s32.totalorder %s17, %s19
      %p23 = scmp.eq.s32.totalorder %s9, 0
      %p24 = por %p22, %p23
      %p25 = scmp.ne.s32.totalorder %s17, %s19
      %p26 = scmp.eq.s32.totalorder %s14, 1
      %p27 = por %p25, %p26
      %p28 = scmp.ne.s32.totalorder %s19, %s20
      %p29 = scmp.eq.s32.totalorder %s14, 0
      %p30 = por %p28, %p29
      %p31 = scmp.ne.s32.totalorder %s19, %s20
      %p32 = scmp.eq.s32.totalorder %s15, 1
      %p33 = por %p31, %p32
      %p35 = scmp.ne.s32.totalorder %s20, %s34
      %p36 = scmp.eq.s32.totalorder %s15, 0
      %p37 = por %p35, %p36
      %s38 = ssub.s32 %s9, %s16
      %p39 = scmp.eq.s32.totalorder %s38, 0
      %s41 = sadd.s32 %s40, 1
      %s42 = scalar_select %p39, %s40, %s41
      %p45 = pneg %p39
      %p46 = scmp.eq.s32.totalorder %s9, 1
      %p47 = por %p45, %p46
      %p48 = scmp.ne.s32.totalorder %s40, %s43
      %p49 = scmp.eq.s32.totalorder %s9, 0
      %p50 = por %p48, %p49
      %p51 = scmp.ne.s32.totalorder %s40, %s43
      %p52 = scmp.eq.s32.totalorder %s14, 1
      %p53 = por %p51, %p52
      %p54 = scmp.ne.s32.totalorder %s43, %s44
      %p55 = scmp.eq.s32.totalorder %s14, 0
      %p56 = por %p54, %p55
      %p57 = scmp.ne.s32.totalorder %s43, %s44
      %p58 = scmp.eq.s32.totalorder %s15, 1
      %p59 = por %p57, %p58
      %p61 = scmp.ne.s32.totalorder %s44, %s60
      %p62 = scmp.eq.s32.totalorder %s15, 0
      %p63 = por %p61, %p62
      %s64 = ssub.s32 %s9, %s16
      %p65 = scmp.eq.s32.totalorder %s64, 0
      %s67 = sadd.s32 %s66, 1
      %s68 = scalar_select %p65, %s66, %s67
      %p71 = pneg %p65
      %p72 = scmp.eq.s32.totalorder %s9, 1
      %p73 = por %p71, %p72
      %p74 = scmp.ne.s32.totalorder %s66, %s69
      %p75 = scmp.eq.s32.totalorder %s9, 0
      %p76 = por %p74, %p75
      %p77 = scmp.ne.s32.totalorder %s66, %s69
      %p78 = scmp.eq.s32.totalorder %s14, 1
      %p79 = por %p77, %p78
      %p80 = scmp.ne.s32.totalorder %s69, %s70
      %p81 = scmp.eq.s32.totalorder %s14, 0
      %p82 = por %p80, %p81
      %p83 = scmp.ne.s32.totalorder %s69, %s70
      %p84 = scmp.eq.s32.totalorder %s15, 1
      %p85 = por %p83, %p84
      %p87 = scmp.ne.s32.totalorder %s70, %s86
      %p88 = scmp.eq.s32.totalorder %s15, 0
      %p89 = por %p87, %p88
      %s90 = ssub.s32 %s9, %s16
      %p91 = scmp.eq.s32.totalorder %s90, 0
      %s93 = sadd.s32 %s92, 1
      %s94 = scalar_select %p91, %s92, %s93
      %p97 = pneg %p91
      %p98 = scmp.eq.s32.totalorder %s9, 1
      %p99 = por %p97, %p98
      %p100 = scmp.ne.s32.totalorder %s92, %s95
      %p101 = scmp.eq.s32.totalorder %s9, 0
      %p102 = por %p100, %p101
      %p103 = scmp.ne.s32.totalorder %s92, %s95
      %p104 = scmp.eq.s32.totalorder %s14, 1
      %p105 = por %p103, %p104
      %p106 = scmp.ne.s32.totalorder %s95, %s96
      %p107 = scmp.eq.s32.totalorder %s14, 0
      %p108 = por %p106, %p107
      %p109 = scmp.ne.s32.totalorder %s95, %s96
      %p110 = scmp.eq.s32.totalorder %s15, 1
      %p111 = por %p109, %p110
      %p113 = scmp.ne.s32.totalorder %s96, %s112
      %p114 = scmp.eq.s32.totalorder %s15, 0
      %p115 = por %p113, %p114
      %p116 = scmp.le.s32.totalorder 1, %s9
      %p117 = scmp.lt.s32.totalorder %s9, 3
      %p118 = pnand %p116, %p117
      %p119 = pneg %p118
      // Predicated region
      $region9: #{mixprop_forward.3} parent=5 // pred_check
        _
      $region10: #{mixprop_forward.3} parent=5 // pred_check_branch
        %121 = sbr.rel (%p118) target = $region12
      $region11: #{mixprop_forward.3} parent=5 // pred_region
        %s122 = ssub.s32 %s9, 1
        // Predicated region
        $region13: #{mixprop_forward.3} parent=11 // pred_check
          %p123 = pneg %p30
        $region14: #{mixprop_forward.3} parent=11 // pred_check_branch
          %125 = sbr.rel (%p123) target = $region16
        $region15: #{mixprop_forward.3} parent=11 // pred_region
          _
        $region16: #{mixprop_forward.3} parent=11 // pred_fallthru
          _
      $region12: #{mixprop_forward.3} parent=5 // pred_fallthru
        _
      %p126 = scmp.lt.s32.totalorder %s9, 2
      // Predicated region
      $region17: #{mixprop_forward.3} parent=5 // pred_check
        %p127 = pneg %p126
      $region18: #{mixprop_forward.3} parent=5 // pred_check_branch
        %129 = sbr.rel (%p127) target = $region20
      $region19: #{mixprop_forward.3} parent=5 // pred_region
        // Predicated region
        $region21: #{mixprop_forward.3} parent=19 // pred_check
          %p130 = pneg %p50
        $region22: #{mixprop_forward.3} parent=19 // pred_check_branch
          %132 = sbr.rel (%p130) target = $region24
        $region23: #{mixprop_forward.3} parent=19 // pred_region
          %s133 = sand.u32 %s40, 1
          %s134 = sand.u32 %s40, 1
          %s135 = smul.addr %s134, 16
          %s136 = scalar_lea.vmem [#allocation2], %s135
          %s137 = smul.addr %s9, 8
          %s138 = scalar_lea.vmem %s1, %s137
          // Predicated region
          $region25: #{mixprop_forward.3} parent=23 // pred_check
            _
          $region26: #{mixprop_forward.3} parent=23 // pred_check_branch
            %140 = sbr.rel (0) target = $region28
          $region27: #{mixprop_forward.3} parent=23 // pred_region
            // Predicated region
            $region29: #{mixprop_forward.3} parent=27 // pred_check
              _
            $region30: #{mixprop_forward.3} parent=27 // pred_check_branch
              %142 = sbr.rel (0) target = $region32
            $region31: #{mixprop_forward.3} parent=27 // pred_region
              // Predicated region
              $region44: #{mixprop_forward.3} parent=31 // pred_check
                _
              $region45: #{mixprop_forward.3} parent=31 // pred_check_branch
                %159 = sbr.rel (0) target = $region47
              $region46: #{mixprop_forward.3} parent=31 // pred_region
                loop: start=0, step=1, limit=1
                $region48: #{mixprop_forward.3} parent=46 // loop_pre_header
                  _
                $region49: #{mixprop_forward.3} parent=46 // loop_header
                  %s161 = sphi 0, %s165
                  %p162 = scmp.ge.s32.totalorder %s161, 1
                  %s166 = sphi %s138, %s138
                  %s167 = sphi %s136, %s136
                $region50: #{mixprop_forward.3} parent=46 // loop_header_branch
                  %164 = sbr.rel (%p162) target = $region54
                $region51: #{mixprop_forward.3} parent=46 // loop_body
                  %v168 = vld [vmem:[%s166] sm:$0xff]
                  %169 = vst [vmem:[%s167] sm:$0xff] %v168
                  %v170 = vld [vmem:[%s166 + $0x10] sm:$0xff]
                  %171 = vst [vmem:[%s167 + $0x8] sm:$0xff] %v170
                $region52: #{mixprop_forward.3} parent=46 // loop_footer
                  %s165 = sadd.s32 1, %s161
                $region53: #{mixprop_forward.3} parent=46 // loop_footer_branch
                  %160 = sbr.rel target = $region49
                $region54: #{mixprop_forward.3} parent=46 // loop_exit
                  _
              $region47: #{mixprop_forward.3} parent=31 // pred_fallthru
                _
              // Predicated region
              $region55: #{mixprop_forward.3} parent=31 // pred_check
                _
              $region56: #{mixprop_forward.3} parent=31 // pred_check_branch
                %173 = sbr.rel target = $region58
              $region57: #{mixprop_forward.3} parent=31 // pred_region
                _
              $region58: #{mixprop_forward.3} parent=31 // pred_fallthru
                _
            $region32: #{mixprop_forward.3} parent=27 // pred_fallthru
              _
            // Predicated region
            $region33: #{mixprop_forward.3} parent=27 // pred_check
              _
            $region34: #{mixprop_forward.3} parent=27 // pred_check_branch
              %144 = sbr.rel target = $region36
            $region35: #{mixprop_forward.3} parent=27 // pred_region
              loop: start=0, step=1, limit=1
              $region37: #{mixprop_forward.3} parent=35 // loop_pre_header
                _
              $region38: #{mixprop_forward.3} parent=35 // loop_header
                %s147 = sphi 0, %s151
                %p148 = scmp.ge.s32.totalorder %s147, 1
                %s152 = sphi %s138, %s138
                %s153 = sphi %s136, %s136
              $region39: #{mixprop_forward.3} parent=35 // loop_header_branch
                %150 = sbr.rel (%p148) target = $region43
              $region40: #{mixprop_forward.3} parent=35 // loop_body
                %v154 = vld [vmem:[%s152] sm:$0xff]
                %155 = vst [vmem:[%s153] sm:$0xff] %v154
                %v156 = vld [vmem:[%s152 + $0x10] sm:$0xff]
                %157 = vst [vmem:[%s153 + $0x8] sm:$0xff] %v156
              $region41: #{mixprop_forward.3} parent=35 // loop_footer
                %s151 = sadd.s32 1, %s147
              $region42: #{mixprop_forward.3} parent=35 // loop_footer_branch
                %146 = sbr.rel target = $region38
              $region43: #{mixprop_forward.3} parent=35 // loop_exit
                _
            $region36: #{mixprop_forward.3} parent=27 // pred_fallthru
              _
          $region28: #{mixprop_forward.3} parent=23 // pred_fallthru
            _
          %174 = vnop
        $region24: #{mixprop_forward.3} parent=19 // pred_fallthru
          _
        // Predicated region
        $region59: #{mixprop_forward.3} parent=19 // pred_check
          %p175 = pneg %p76
        $region60: #{mixprop_forward.3} parent=19 // pred_check_branch
          %177 = sbr.rel (%p175) target = $region62
        $region61: #{mixprop_forward.3} parent=19 // pred_region
          %s178 = sand.u32 %s66, 1
          %s179 = sand.u32 %s66, 1
          %s180 = smul.addr %s179, 16
          %s181 = scalar_lea.vmem [#allocation3], %s180
          %s182 = smul.addr %s9, 8
          %s183 = scalar_lea.vmem %s2, %s182
          // Predicated region
          $region63: #{mixprop_forward.3} parent=61 // pred_check
            _
          $region64: #{mixprop_forward.3} parent=61 // pred_check_branch
            %185 = sbr.rel (0) target = $region66
          $region65: #{mixprop_forward.3} parent=61 // pred_region
            // Predicated region
            $region67: #{mixprop_forward.3} parent=65 // pred_check
              _
            $region68: #{mixprop_forward.3} parent=65 // pred_check_branch
              %187 = sbr.rel (0) target = $region70
            $region69: #{mixprop_forward.3} parent=65 // pred_region
              // Predicated region
              $region82: #{mixprop_forward.3} parent=69 // pred_check
                _
              $region83: #{mixprop_forward.3} parent=69 // pred_check_branch
                %204 = sbr.rel (0) target = $region85
              $region84: #{mixprop_forward.3} parent=69 // pred_region
                loop: start=0, step=1, limit=1
                $region86: #{mixprop_forward.3} parent=84 // loop_pre_header
                  _
                $region87: #{mixprop_forward.3} parent=84 // loop_header
                  %s206 = sphi 0, %s210
                  %p207 = scmp.ge.s32.totalorder %s206, 1
                  %s211 = sphi %s183, %s183
                  %s212 = sphi %s181, %s181
                $region88: #{mixprop_forward.3} parent=84 // loop_header_branch
                  %209 = sbr.rel (%p207) target = $region92
                $region89: #{mixprop_forward.3} parent=84 // loop_body
                  %v213 = vld [vmem:[%s211] sm:$0xff]
                  %214 = vst [vmem:[%s212] sm:$0xff] %v213
                  %v215 = vld [vmem:[%s211 + $0x10] sm:$0xff]
                  %216 = vst [vmem:[%s212 + $0x8] sm:$0xff] %v215
                $region90: #{mixprop_forward.3} parent=84 // loop_footer
                  %s210 = sadd.s32 1, %s206
                $region91: #{mixprop_forward.3} parent=84 // loop_footer_branch
                  %205 = sbr.rel target = $region87
                $region92: #{mixprop_forward.3} parent=84 // loop_exit
                  _
              $region85: #{mixprop_forward.3} parent=69 // pred_fallthru
                _
              // Predicated region
              $region93: #{mixprop_forward.3} parent=69 // pred_check
                _
              $region94: #{mixprop_forward.3} parent=69 // pred_check_branch
                %218 = sbr.rel target = $region96
              $region95: #{mixprop_forward.3} parent=69 // pred_region
                _
              $region96: #{mixprop_forward.3} parent=69 // pred_fallthru
                _
            $region70: #{mixprop_forward.3} parent=65 // pred_fallthru
              _
            // Predicated region
            $region71: #{mixprop_forward.3} parent=65 // pred_check
              _
            $region72: #{mixprop_forward.3} parent=65 // pred_check_branch
              %189 = sbr.rel target = $region74
            $region73: #{mixprop_forward.3} parent=65 // pred_region
              loop: start=0, step=1, limit=1
              $region75: #{mixprop_forward.3} parent=73 // loop_pre_header
                _
              $region76: #{mixprop_forward.3} parent=73 // loop_header
                %s192 = sphi 0, %s196
                %p193 = scmp.ge.s32.totalorder %s192, 1
                %s197 = sphi %s183, %s183
                %s198 = sphi %s181, %s181
              $region77: #{mixprop_forward.3} parent=73 // loop_header_branch
                %195 = sbr.rel (%p193) target = $region81
              $region78: #{mixprop_forward.3} parent=73 // loop_body
                %v199 = vld [vmem:[%s197] sm:$0xff]
                %200 = vst [vmem:[%s198] sm:$0xff] %v199
                %v201 = vld [vmem:[%s197 + $0x10] sm:$0xff]
                %202 = vst [vmem:[%s198 + $0x8] sm:$0xff] %v201
              $region79: #{mixprop_forward.3} parent=73 // loop_footer
                %s196 = sadd.s32 1, %s192
              $region80: #{mixprop_forward.3} parent=73 // loop_footer_branch
                %191 = sbr.rel target = $region76
              $region81: #{mixprop_forward.3} parent=73 // loop_exit
                _
            $region74: #{mixprop_forward.3} parent=65 // pred_fallthru
              _
          $region66: #{mixprop_forward.3} parent=61 // pred_fallthru
            _
          %219 = vnop
        $region62: #{mixprop_forward.3} parent=19 // pred_fallthru
          _
      $region20: #{mixprop_forward.3} parent=5 // pred_fallthru
        _
      %p220 = scmp.le.s32.totalorder 1, %s9
      %p221 = scmp.lt.s32.totalorder %s9, 3
      %p222 = pnand %p220, %p221
      %p223 = pneg %p222
      // Predicated region
      $region97: #{mixprop_forward.3} parent=5 // pred_check
        _
      $region98: #{mixprop_forward.3} parent=5 // pred_check_branch
        %225 = sbr.rel (%p222) target = $region100
      $region99: #{mixprop_forward.3} parent=5 // pred_region
        %s226 = ssub.s32 %s9, 1
        %s227 = sand.u32 %s43, 1
        %s228 = sand.u32 %s43, 1
        %s229 = smul.addr %s228, 16
        %s230 = scalar_lea.vmem [#allocation2], %s229
        // Predicated region
        $region101: #{mixprop_forward.3} parent=99 // pred_check
          %p231 = pneg %p56
        $region102: #{mixprop_forward.3} parent=99 // pred_check_branch
          %233 = sbr.rel (%p231) target = $region104
        $region103: #{mixprop_forward.3} parent=99 // pred_region
          _
        $region104: #{mixprop_forward.3} parent=99 // pred_fallthru
          _
        %s234 = sand.u32 %s69, 1
        %s235 = sand.u32 %s69, 1
        %s236 = smul.addr %s235, 16
        %s237 = scalar_lea.vmem [#allocation3], %s236
        // Predicated region
        $region105: #{mixprop_forward.3} parent=99 // pred_check
          %p238 = pneg %p82
        $region106: #{mixprop_forward.3} parent=99 // pred_check_branch
          %240 = sbr.rel (%p238) target = $region108
        $region107: #{mixprop_forward.3} parent=99 // pred_region
          _
        $region108: #{mixprop_forward.3} parent=99 // pred_fallthru
          _
        %p241 = pneg %p30
        %p242 = pneg %p27
        %s243 = sand.u32 %s43, 1
        %s244 = sand.u32 %s43, 1
        %s245 = smul.addr %s244, 16
        %s246 = scalar_lea.vmem [#allocation2], %s245
        %p247 = pneg %p56
        %p248 = pneg %p53
        %s249 = sand.u32 %s69, 1
        %s250 = sand.u32 %s69, 1
        %s251 = smul.addr %s250, 16
        %s252 = scalar_lea.vmem [#allocation3], %s251
        %p253 = pneg %p82
        %p254 = pneg %p79
        %p255 = pneg %p108
        %p256 = pneg %p105
        %s257 = sand.u32 %s95, 1
        %s258 = sand.u32 %s95, 1
        %s259 = smul.addr %s258, 16
        %s260 = scalar_lea.vmem [#allocation4], %s259
        %v261 = vld [vmem:[%s0] sm:$0xff]
        %v262 = vld [vmem:[%s0 + $0x8] sm:$0xff]
        %v263 = vld [vmem:[%s237] sm:$0xff]
        %v264 = vld [vmem:[%s237 + $0x8] sm:$0xff]
        %vm265 = vcmask 130048
        %v267 = vsel %vm265, %v261, 0
        %v270 = vsel %vm265, %v262, 0
        %272 = vmatprep.subr.mxu0 0.0
        %273 = vmatpush1.msra.mxu0 %v263
        %274 = vmatprep.subr.mxu0 0.0
        %275 = vmatpush1.msra.mxu0 %v264
        %276 = vmatprep.subr.mxu0 0.0
        %277 = vmatpush1.msra.mxu0 0.0
        %278 = vmatprep.subr.mxu0 0.0
        %279 = vmatpush1.msra.mxu0 0.0
        %280 = vmatprep.subr.mxu0 0.0
        %281 = vmatpush1.msra.mxu0 0.0
        %282 = vmatprep.subr.mxu0 0.0
        %283 = vmatpush1.msra.mxu0 0.0
        %284 = vmatprep.subr.mxu0 0.0
        %285 = vmatpush1.msra.mxu0 0.0
        %286 = vmatprep.subr.mxu0 0.0
        %287 = vmatpush1.msra.mxu0 0.0
        %288 = vmatprep.subr.mxu0 0.0
        %289 = vmatpush1.msra.mxu0 0.0
        %290 = vmatprep.subr.mxu0 0.0
        %291 = vmatpush1.msra.mxu0 0.0
        %292 = vmatprep.subr.mxu0 0.0
        %293 = vmatpush1.msra.mxu0 0.0
        %294 = vmatprep.subr.mxu0 0.0
        %295 = vmatpush1.msra.mxu0 0.0
        %296 = vmatprep.subr.mxu0 0.0
        %297 = vmatpush1.msra.mxu0 0.0
        %298 = vmatprep.subr.mxu0 0.0
        %299 = vmatpush1.msra.mxu0 0.0
        %300 = vmatprep.subr.mxu0 0.0
        %301 = vmatpush1.msra.mxu0 0.0
        %302 = vmatprep.subr.mxu0 0.0
        %303 = vmatpush1.msra.mxu0 0.0
        %304 = vmatprep.subr.mxu0 0.0
        %305 = vmatpush1.msra.mxu0 0.0
        %306 = vmatprep.subr.mxu0 0.0
        %307 = vmatpush1.msra.mxu0 0.0
        %308 = vmatprep.subr.mxu0 0.0
        %309 = vmatpush1.msra.mxu0 0.0
        %310 = vmatprep.subr.mxu0 0.0
        %311 = vmatpush1.msra.mxu0 0.0
        %312 = vmatprep.subr.mxu0 0.0
        %313 = vmatpush1.msra.mxu0 0.0
        %314 = vmatprep.subr.mxu0 0.0
        %315 = vmatpush1.msra.mxu0 0.0
        %316 = vmatprep.subr.mxu0 0.0
        %317 = vmatpush1.msra.mxu0 0.0
        %318 = vmatprep.subr.mxu0 0.0
        %319 = vmatpush1.msra.mxu0 0.0
        %320 = vmatprep.subr.mxu0 0.0
        %321 = vmatpush1.msra.mxu0 0.0
        %322 = vmatprep.subr.mxu0 0.0
        %323 = vmatpush1.msra.mxu0 0.0
        %324 = vmatprep.subr.mxu0 0.0
        %325 = vmatpush1.msra.mxu0 0.0
        %326 = vmatprep.subr.mxu0 0.0
        %327 = vmatpush1.msra.mxu0 0.0
        %328 = vmatprep.subr.mxu0 0.0
        %329 = vmatpush1.msra.mxu0 0.0
        %330 = vmatprep.subr.mxu0 0.0
        %331 = vmatpush1.msra.mxu0 0.0
        %332 = vmatprep.subr.mxu0 0.0
        %333 = vmatpush1.msra.mxu0 0.0
        %334 = vmatprep.subr.mxu0 0.0
        %335 = vmatpush1.msra.mxu0 0.0
        %336 = vmatprep.mubr.f32.mxu0 0.0
        %337 = vmatmul.mubr.f32.gmra.mrb[0].mxu0 %v267
        %v338 = vpop.f32.mrb[0].mxu0
        %v339 = vadd.f32 0.0, %v338
        %v340 = vpop.f32.mrb[0].mxu0
        %341 = vmatprep.mubr.f32.mxu0 0.0
        %342 = vmatmul.mubr.f32.gmra.mrb[0].mxu0 %v270
        %v343 = vpop.f32.mrb[0].mxu0
        %v344 = vadd.f32 0.0, %v343
        %v345 = vpop.f32.mrb[0].mxu0
        %346 = vdwg.mxu0
        %v347 = vld [vmem:[%s230] sm:$0xff]
        %v348 = vld [vmem:[%s230 + $0x8] sm:$0xff]
        %v349 = vmul.f32 %v347, 0.05
        %v350 = vmul.f32 %v348, 0.05
        %v351 = vmul.f32 %v339, 0.95
        %v352 = vmul.f32 %v344, 0.95
        %v353 = vadd.f32 %v349, %v351
        %v354 = vadd.f32 %v350, %v352
        %355 = vst [vmem:[%s260] sm:$0xff] %v353
        %356 = vst [vmem:[%s260 + $0x8] sm:$0xff] %v354
        %s357 = sand.u32 %s95, 1
        %s358 = sand.u32 %s95, 1
        %s359 = smul.addr %s358, 16
        %s360 = scalar_lea.vmem [#allocation4], %s359
        // Predicated region
        $region109: #{mixprop_forward.3} parent=99 // pred_check
          %p361 = pneg %p105
        $region110: #{mixprop_forward.3} parent=99 // pred_check_branch
          %363 = sbr.rel (%p361) target = $region112
        $region111: #{mixprop_forward.3} parent=99 // pred_region
          %s364 = smul.addr %s14, 8
          %s365 = scalar_lea.vmem %s3, %s364
          // Predicated region
          $region113: #{mixprop_forward.3} parent=111 // pred_check
            _
          $region114: #{mixprop_forward.3} parent=111 // pred_check_branch
            %367 = sbr.rel (0) target = $region116
          $region115: #{mixprop_forward.3} parent=111 // pred_region
            // Predicated region
            $region117: #{mixprop_forward.3} parent=115 // pred_check
              _
            $region118: #{mixprop_forward.3} parent=115 // pred_check_branch
              %369 = sbr.rel (0) target = $region120
            $region119: #{mixprop_forward.3} parent=115 // pred_region
              // Predicated region
              $region132: #{mixprop_forward.3} parent=119 // pred_check
                _
              $region133: #{mixprop_forward.3} parent=119 // pred_check_branch
                %386 = sbr.rel (0) target = $region135
              $region134: #{mixprop_forward.3} parent=119 // pred_region
                loop: start=0, step=1, limit=1
                $region136: #{mixprop_forward.3} parent=134 // loop_pre_header
                  _
                $region137: #{mixprop_forward.3} parent=134 // loop_header
                  %s388 = sphi 0, %s392
                  %p389 = scmp.ge.s32.totalorder %s388, 1
                  %s393 = sphi %s360, %s360
                  %s394 = sphi %s365, %s365
                $region138: #{mixprop_forward.3} parent=134 // loop_header_branch
                  %391 = sbr.rel (%p389) target = $region142
                $region139: #{mixprop_forward.3} parent=134 // loop_body
                  %v395 = vld [vmem:[%s393] sm:$0xff]
                  %396 = vst [vmem:[%s394] sm:$0xff] %v395
                  %v397 = vld [vmem:[%s393 + $0x8] sm:$0xff]
                  %398 = vst [vmem:[%s394 + $0x10] sm:$0xff] %v397
                $region140: #{mixprop_forward.3} parent=134 // loop_footer
                  %s392 = sadd.s32 1, %s388
                $region141: #{mixprop_forward.3} parent=134 // loop_footer_branch
                  %387 = sbr.rel target = $region137
                $region142: #{mixprop_forward.3} parent=134 // loop_exit
                  _
              $region135: #{mixprop_forward.3} parent=119 // pred_fallthru
                _
              // Predicated region
              $region143: #{mixprop_forward.3} parent=119 // pred_check
                _
              $region144: #{mixprop_forward.3} parent=119 // pred_check_branch
                %400 = sbr.rel target = $region146
              $region145: #{mixprop_forward.3} parent=119 // pred_region
                _
              $region146: #{mixprop_forward.3} parent=119 // pred_fallthru
                _
            $region120: #{mixprop_forward.3} parent=115 // pred_fallthru
              _
            // Predicated region
            $region121: #{mixprop_forward.3} parent=115 // pred_check
              _
            $region122: #{mixprop_forward.3} parent=115 // pred_check_branch
              %371 = sbr.rel target = $region124
            $region123: #{mixprop_forward.3} parent=115 // pred_region
              loop: start=0, step=1, limit=1
              $region125: #{mixprop_forward.3} parent=123 // loop_pre_header
                _
              $region126: #{mixprop_forward.3} parent=123 // loop_header
                %s374 = sphi 0, %s378
                %p375 = scmp.ge.s32.totalorder %s374, 1
                %s379 = sphi %s360, %s360
                %s380 = sphi %s365, %s365
              $region127: #{mixprop_forward.3} parent=123 // loop_header_branch
                %377 = sbr.rel (%p375) target = $region131
              $region128: #{mixprop_forward.3} parent=123 // loop_body
                %v381 = vld [vmem:[%s379] sm:$0xff]
                %382 = vst [vmem:[%s380] sm:$0xff] %v381
                %v383 = vld [vmem:[%s379 + $0x8] sm:$0xff]
                %384 = vst [vmem:[%s380 + $0x10] sm:$0xff] %v383
              $region129: #{mixprop_forward.3} parent=123 // loop_footer
                %s378 = sadd.s32 1, %s374
              $region130: #{mixprop_forward.3} parent=123 // loop_footer_branch
                %373 = sbr.rel target = $region126
              $region131: #{mixprop_forward.3} parent=123 // loop_exit
                _
            $region124: #{mixprop_forward.3} parent=115 // pred_fallthru
              _
          $region116: #{mixprop_forward.3} parent=111 // pred_fallthru
            _
          %401 = vnop
        $region112: #{mixprop_forward.3} parent=99 // pred_fallthru
          _
      $region100: #{mixprop_forward.3} parent=5 // pred_fallthru
        _
      %p402 = scmp.le.s32.totalorder 2, %s9
      // Predicated region
      $region147: #{mixprop_forward.3} parent=5 // pred_check
        %p403 = pneg %p402
      $region148: #{mixprop_forward.3} parent=5 // pred_check_branch
        %405 = sbr.rel (%p403) target = $region150
      $region149: #{mixprop_forward.3} parent=5 // pred_region
        %s406 = ssub.s32 %s9, 2
        // Predicated region
        $region151: #{mixprop_forward.3} parent=149 // pred_check
          %p407 = pneg %p111
        $region152: #{mixprop_forward.3} parent=149 // pred_check_branch
          %409 = sbr.rel (%p407) target = $region154
        $region153: #{mixprop_forward.3} parent=149 // pred_region
          %s410 = sand.u32 %s96, 1
          %s411 = sand.u32 %s96, 1
          %s412 = smul.addr %s411, 16
          %s413 = scalar_lea.vmem [#allocation4], %s412
        $region154: #{mixprop_forward.3} parent=149 // pred_fallthru
          _
      $region150: #{mixprop_forward.3} parent=5 // pred_fallthru
        _
    $region6: #{mixprop_forward.3} parent=1 // loop_footer
      %s13 = sadd.s32 1, %s9
    $region7: #{mixprop_forward.3} parent=1 // loop_footer_branch
      %8 = sbr.rel target = $region3
    $region8: #{mixprop_forward.3} parent=1 // loop_exit
      _

// kernel: mixprop_forward.5
$region0: #{mixprop_forward.5}
  #allocation0 [shape = 'u32[]', space=smem, size = 0x4, offset = 0x4, fixed_abs, tag = 'smem constant byte address 0x4 - core index']
  #allocation1 [shape = 'u32[144,128]{1,0:T(1,128)}', space=vmem, size = 0x12000, scoped, tag = 'internal scratch']
  %s0 = inlined_call_operand.vmem [shape: f32[8,12], index: 0, kind: input, shape index: {}]
  %s1 = inlined_call_operand.vmem [shape: f32[8,1], index: 1, kind: input, shape index: {}]
  %s2 = inlined_call_operand.vmem [shape: f32[12,1024], index: 2, kind: input, shape index: {}]
  %s3 = inlined_call_operand.vmem [shape: f32[8,1024], index: 3, kind: output, shape index: {}]
  %s4 = sld [smem:[#allocation0]]
  $region68: #{mixprop_forward.5} parent=0
    _
  %s6 = ssub.s32 1, %s4
  %s7 = scalar_select 0, %s6, %s4
  $region1: #{mixprop_forward.5} parent=0
    #allocation2 [shape = 'u8[65536]{0}', space=vmem, size = 0x10000, scoped, tag = 'input window, operand 2']
    loop: start=0, step=1, limit=4
    $region2: #{mixprop_forward.5} parent=1 // loop_pre_header
      _
    $region3: #{mixprop_forward.5} parent=1 // loop_header
      %s9 = sphi 0, %s13
      %p10 = scmp.ge.s32.totalorder %s9, 4
      %s17 = sphi 0, %s17
      %s19 = sphi 0, %s17
      %s20 = sphi 0, %s19
      %s34 = sphi 0, %s20
      %s38 = sphi 0, %s38
      %s40 = sphi 0, %s38
      %s41 = sphi 0, %s40
      %s55 = sphi 0, %s41
      %s61 = sphi 0, %s63
      %s64 = sphi 0, %s61
      %s65 = sphi 0, %s64
      %s81 = sphi 0, %s65
      %s87 = sphi 0, %s89
      %s90 = sphi 0, %s87
      %s91 = sphi 0, %s90
      %s107 = sphi 0, %s91
    $region4: #{mixprop_forward.5} parent=1 // loop_header_branch
      %12 = sbr.rel (%p10) target = $region8
    $region5: #{mixprop_forward.5} parent=1 // loop_body
      %s14 = ssub.s32 %s9, 1
      %s15 = ssub.s32 %s9, 2
      %s16 = sadd.s32 %s9, 1
      %s18 = sadd.s32 %s17, 1
      %p21 = scmp.eq.s32.totalorder %s9, 1
      %p22 = scmp.ne.s32.totalorder %s17, %s19
      %p23 = scmp.eq.s32.totalorder %s9, 0
      %p24 = por %p22, %p23
      %p25 = scmp.ne.s32.totalorder %s17, %s19
      %p26 = scmp.eq.s32.totalorder %s14, 1
      %p27 = por %p25, %p26
      %p28 = scmp.ne.s32.totalorder %s19, %s20
      %p29 = scmp.eq.s32.totalorder %s14, 0
      %p30 = por %p28, %p29
      %p31 = scmp.ne.s32.totalorder %s19, %s20
      %p32 = scmp.eq.s32.totalorder %s15, 1
      %p33 = por %p31, %p32
      %p35 = scmp.ne.s32.totalorder %s20, %s34
      %p36 = scmp.eq.s32.totalorder %s15, 0
      %p37 = por %p35, %p36
      %s39 = sadd.s32 %s38, 1
      %p42 = scmp.eq.s32.totalorder %s9, 1
      %p43 = scmp.ne.s32.totalorder %s38, %s40
      %p44 = scmp.eq.s32.totalorder %s9, 0
      %p45 = por %p43, %p44
      %p46 = scmp.ne.s32.totalorder %s38, %s40
      %p47 = scmp.eq.s32.totalorder %s14, 1
      %p48 = por %p46, %p47
      %p49 = scmp.ne.s32.totalorder %s40, %s41
      %p50 = scmp.eq.s32.totalorder %s14, 0
      %p51 = por %p49, %p50
      %p52 = scmp.ne.s32.totalorder %s40, %s41
      %p53 = scmp.eq.s32.totalorder %s15, 1
      %p54 = por %p52, %p53
      %p56 = scmp.ne.s32.totalorder %s41, %s55
      %p57 = scmp.eq.s32.totalorder %s15, 0
      %p58 = por %p56, %p57
      %s59 = ssub.s32 %s9, %s16
      %p60 = scmp.eq.s32.totalorder %s59, 0
      %s62 = sadd.s32 %s61, 1
      %s63 = scalar_select %p60, %s61, %s62
      %p66 = pneg %p60
      %p67 = scmp.eq.s32.totalorder %s9, 1
      %p68 = por %p66, %p67
      %p69 = scmp.ne.s32.totalorder %s61, %s64
      %p70 = scmp.eq.s32.totalorder %s9, 0
      %p71 = por %p69, %p70
      %p72 = scmp.ne.s32.totalorder %s61, %s64
      %p73 = scmp.eq.s32.totalorder %s14, 1
      %p74 = por %p72, %p73
      %p75 = scmp.ne.s32.totalorder %s64, %s65
      %p76 = scmp.eq.s32.totalorder %s14, 0
      %p77 = por %p75, %p76
      %p78 = scmp.ne.s32.totalorder %s64, %s65
      %p79 = scmp.eq.s32.totalorder %s15, 1
      %p80 = por %p78, %p79
      %p82 = scmp.ne.s32.totalorder %s65, %s81
      %p83 = scmp.eq.s32.totalorder %s15, 0
      %p84 = por %p82, %p83
      %s85 = ssub.s32 %s9, %s16
      %p86 = scmp.eq.s32.totalorder %s85, 0
      %s88 = sadd.s32 %s87, 1
      %s89 = scalar_select %p86, %s87, %s88
      %p92 = pneg %p86
      %p93 = scmp.eq.s32.totalorder %s9, 1
      %p94 = por %p92, %p93
      %p95 = scmp.ne.s32.totalorder %s87, %s90
      %p96 = scmp.eq.s32.totalorder %s9, 0
      %p97 = por %p95, %p96
      %p98 = scmp.ne.s32.totalorder %s87, %s90
      %p99 = scmp.eq.s32.totalorder %s14, 1
      %p100 = por %p98, %p99
      %p101 = scmp.ne.s32.totalorder %s90, %s91
      %p102 = scmp.eq.s32.totalorder %s14, 0
      %p103 = por %p101, %p102
      %p104 = scmp.ne.s32.totalorder %s90, %s91
      %p105 = scmp.eq.s32.totalorder %s15, 1
      %p106 = por %p104, %p105
      %p108 = scmp.ne.s32.totalorder %s91, %s107
      %p109 = scmp.eq.s32.totalorder %s15, 0
      %p110 = por %p108, %p109
      %p111 = scmp.le.s32.totalorder 1, %s9
      %p112 = scmp.lt.s32.totalorder %s9, 3
      %p113 = pnand %p111, %p112
      %p114 = pneg %p113
      // Predicated region
      $region9: #{mixprop_forward.5} parent=5 // pred_check
        _
      $region10: #{mixprop_forward.5} parent=5 // pred_check_branch
        %116 = sbr.rel (%p113) target = $region12
      $region11: #{mixprop_forward.5} parent=5 // pred_region
        %s117 = ssub.s32 %s9, 1
        // Predicated region
        $region13: #{mixprop_forward.5} parent=11 // pred_check
          %p118 = pneg %p30
        $region14: #{mixprop_forward.5} parent=11 // pred_check_branch
          %120 = sbr.rel (%p118) target = $region16
        $region15: #{mixprop_forward.5} parent=11 // pred_region
          _
        $region16: #{mixprop_forward.5} parent=11 // pred_fallthru
          _
        // Predicated region
        $region17: #{mixprop_forward.5} parent=11 // pred_check
          %p121 = pneg %p51
        $region18: #{mixprop_forward.5} parent=11 // pred_check_branch
          %123 = sbr.rel (%p121) target = $region20
        $region19: #{mixprop_forward.5} parent=11 // pred_region
          _
        $region20: #{mixprop_forward.5} parent=11 // pred_fallthru
          _
      $region12: #{mixprop_forward.5} parent=5 // pred_fallthru
        _
      %p124 = scmp.lt.s32.totalorder %s9, 2
      // Predicated region
      $region21: #{mixprop_forward.5} parent=5 // pred_check
        %p125 = pneg %p124
      $region22: #{mixprop_forward.5} parent=5 // pred_check_branch
        %127 = sbr.rel (%p125) target = $region24
      $region23: #{mixprop_forward.5} parent=5 // pred_region
        // Predicated region
        $region25: #{mixprop_forward.5} parent=23 // pred_check
          %p128 = pneg %p71
        $region26: #{mixprop_forward.5} parent=23 // pred_check_branch
          %130 = sbr.rel (%p128) target = $region28
        $region27: #{mixprop_forward.5} parent=23 // pred_region
          %s131 = sand.u32 %s61, 1
          %s132 = sand.u32 %s61, 1
          %s133 = smul.addr %s132, 64
          %s134 = scalar_lea.vmem [#allocation2], %s133
          %s135 = smul.u32 4, %s9
          %s136 = smul.addr %s135, 8
          %s137 = scalar_lea.vmem %s2, %s136
          // Predicated region
          $region29: #{mixprop_forward.5} parent=27 // pred_check
            _
          $region30: #{mixprop_forward.5} parent=27 // pred_check_branch
            %139 = sbr.rel (0) target = $region32
          $region31: #{mixprop_forward.5} parent=27 // pred_region
            // Predicated region
            $region33: #{mixprop_forward.5} parent=31 // pred_check
              _
            $region34: #{mixprop_forward.5} parent=31 // pred_check_branch
              %141 = sbr.rel (0) target = $region36
            $region35: #{mixprop_forward.5} parent=31 // pred_region
              loop: start=0, step=1, limit=1
              $region37: #{mixprop_forward.5} parent=35 // loop_pre_header
                _
              $region38: #{mixprop_forward.5} parent=35 // loop_header
                %s143 = sphi 0, %s147
                %p144 = scmp.ge.s32.totalorder %s143, 1
                %s148 = sphi %s137, %s137
                %s149 = sphi %s134, %s134
              $region39: #{mixprop_forward.5} parent=35 // loop_header_branch
                %146 = sbr.rel (%p144) target = $region43
              $region40: #{mixprop_forward.5} parent=35 // loop_body
                %v150 = vld [vmem:[%s148] sm:$0xff]
                %151 = vst [vmem:[%s149] sm:$0xff] %v150
                %v152 = vld [vmem:[%s148 + $0x8] sm:$0xff]
                %153 = vst [vmem:[%s149 + $0x8] sm:$0xff] %v152
                %v154 = vld [vmem:[%s148 + $0x10] sm:$0xff]
                %155 = vst [vmem:[%s149 + $0x10] sm:$0xff] %v154
                %v156 = vld [vmem:[%s148 + $0x18] sm:$0xff]
                %157 = vst [vmem:[%s149 + $0x18] sm:$0xff] %v156
                %v158 = vld [vmem:[%s148 + $0x40] sm:$0xff]
                %159 = vst [vmem:[%s149 + $0x20] sm:$0xff] %v158
                %v160 = vld [vmem:[%s148 + $0x48] sm:$0xff]
                %161 = vst [vmem:[%s149 + $0x28] sm:$0xff] %v160
                %v162 = vld [vmem:[%s148 + $0x50] sm:$0xff]
                %163 = vst [vmem:[%s149 + $0x30] sm:$0xff] %v162
                %v164 = vld [vmem:[%s148 + $0x58] sm:$0xff]
                %165 = vst [vmem:[%s149 + $0x38] sm:$0xff] %v164
              $region41: #{mixprop_forward.5} parent=35 // loop_footer
                %s147 = sadd.s32 1, %s143
              $region42: #{mixprop_forward.5} parent=35 // loop_footer_branch
                %142 = sbr.rel target = $region38
              $region43: #{mixprop_forward.5} parent=35 // loop_exit
                _
            $region36: #{mixprop_forward.5} parent=31 // pred_fallthru
              _
            // Predicated region
            $region44: #{mixprop_forward.5} parent=31 // pred_check
              _
            $region45: #{mixprop_forward.5} parent=31 // pred_check_branch
              %167 = sbr.rel target = $region47
            $region46: #{mixprop_forward.5} parent=31 // pred_region
              _
            $region47: #{mixprop_forward.5} parent=31 // pred_fallthru
              _
          $region32: #{mixprop_forward.5} parent=27 // pred_fallthru
            _
          %168 = vnop
        $region28: #{mixprop_forward.5} parent=23 // pred_fallthru
          _
      $region24: #{mixprop_forward.5} parent=5 // pred_fallthru
        _
      %p169 = scmp.le.s32.totalorder 1, %s9
      %p170 = scmp.lt.s32.totalorder %s9, 3
      %p171 = pnand %p169, %p170
      %p172 = pneg %p171
      // Predicated region
      $region48: #{mixprop_forward.5} parent=5 // pred_check
        _
      $region49: #{mixprop_forward.5} parent=5 // pred_check_branch
        %174 = sbr.rel (%p171) target = $region51
      $region50: #{mixprop_forward.5} parent=5 // pred_region
        %s175 = ssub.s32 %s9, 1
        %s176 = sand.u32 %s64, 1
        %s177 = sand.u32 %s64, 1
        %s178 = smul.addr %s177, 64
        %s179 = scalar_lea.vmem [#allocation2], %s178
        // Predicated region
        $region52: #{mixprop_forward.5} parent=50 // pred_check
          %p180 = pneg %p77
        $region53: #{mixprop_forward.5} parent=50 // pred_check_branch
          %182 = sbr.rel (%p180) target = $region55
        $region54: #{mixprop_forward.5} parent=50 // pred_region
          _
        $region55: #{mixprop_forward.5} parent=50 // pred_fallthru
          _
        %p183 = pneg %p30
        %p184 = pneg %p27
        %p185 = pneg %p51
        %p186 = pneg %p48
        %s187 = sand.u32 %s64, 1
        %s188 = sand.u32 %s64, 1
        %s189 = smul.addr %s188, 64
        %s190 = scalar_lea.vmem [#allocation2], %s189
        %p191 = pneg %p77
        %p192 = pneg %p74
        %p193 = pneg %p103
        %p194 = pneg %p100
        %s195 = smul.u32 4, %s14
        %p196 = scmp.lt.s32.totalorder %s195, 7
        %s197 = scalar_select %p196, %s195, 7
        %s198 = smul.addr %s197, 8
        %s199 = scalar_lea.vmem %s3, %s198
        %s200 = smul.u32 4, %s14
        %s201 = smul.u32 4, %s14
        %p202 = scmp.lt.s32.totalorder %s201, 7
        %s203 = scalar_select %p202, %s201, 7
        %s204 = smul.addr %s203, 8
        %s205 = scalar_lea.vmem %s3, %s204
        %s206 = smul.u32 4, %s14
        %v207 = vld [vmem:[%s0] sm:$0xff]
        %v208 = vld [vmem:[%s179] sm:$0xff]
        %v209 = vld [vmem:[%s179 + $0x8] sm:$0xff]
        %v210 = vld [vmem:[%s179 + $0x10] sm:$0xff]
        %v211 = vld [vmem:[%s179 + $0x18] sm:$0xff]
        %v212 = vld [vmem:[%s179 + $0x20] sm:$0xf]
        %v213 = vld [vmem:[%s179 + $0x28] sm:$0xf]
        %v214 = vld [vmem:[%s179 + $0x30] sm:$0xf]
        %v215 = vld [vmem:[%s179 + $0x38] sm:$0xf]
        %v216 = vld [vmem:[%s1] sm:$0xff]
        %218 = vset.pattern.permute.xlu0 0
        %219 = vperm.xlu0 %218, %v216
        %v220 = vpop.permute.xlu0 %219
        %vm222 = vcmask 97280
        %v224 = vsel %vm222, %v207, 0
        %vm226 = vcmask 1043456
        %v228 = vsel %vm226, %v212, 0
        %v231 = vsel %vm226, %v213, 0
        %v234 = vsel %vm226, %v214, 0
        %v237 = vsel %vm226, %v215, 0
        %239 = vmatprep.subr.mxu0 %v209
        %240 = vmatpush1.msra.mxu0 %v208
        %241 = vmatprep.subr.mxu0 %v231
        %242 = vmatpush1.msra.mxu0 %v228
        %243 = vmatprep.subr.mxu0 0.0
        %244 = vmatpush1.msra.mxu0 0.0
        %245 = vmatprep.subr.mxu0 0.0
        %246 = vmatpush1.msra.mxu0 0.0
        %247 = vmatprep.subr.mxu0 0.0
        %248 = vmatpush1.msra.mxu0 0.0
        %249 = vmatprep.subr.mxu0 0.0
        %250 = vmatpush1.msra.mxu0 0.0
        %251 = vmatprep.subr.mxu0 0.0
        %252 = vmatpush1.msra.mxu0 0.0
        %253 = vmatprep.subr.mxu0 0.0
        %254 = vmatpush1.msra.mxu0 0.0
        %255 = vmatprep.subr.mxu0 0.0
        %256 = vmatpush1.msra.mxu0 0.0
        %257 = vmatprep.subr.mxu0 0.0
        %258 = vmatpush1.msra.mxu0 0.0
        %259 = vmatprep.subr.mxu0 0.0
        %260 = vmatpush1.msra.mxu0 0.0
        %261 = vmatprep.subr.mxu0 0.0
        %262 = vmatpush1.msra.mxu0 0.0
        %263 = vmatprep.subr.mxu0 0.0
        %264 = vmatpush1.msra.mxu0 0.0
        %265 = vmatprep.subr.mxu0 0.0
        %266 = vmatpush1.msra.mxu0 0.0
        %267 = vmatprep.subr.mxu0 0.0
        %268 = vmatpush1.msra.mxu0 0.0
        %269 = vmatprep.subr.mxu0 0.0
        %270 = vmatpush1.msra.mxu0 0.0
        %271 = vmatprep.subr.mxu0 0.0
        %272 = vmatpush1.msra.mxu0 0.0
        %273 = vmatprep.subr.mxu0 0.0
        %274 = vmatpush1.msra.mxu0 0.0
        %275 = vmatprep.subr.mxu0 0.0
        %276 = vmatpush1.msra.mxu0 0.0
        %277 = vmatprep.subr.mxu0 0.0
        %278 = vmatpush1.msra.mxu0 0.0
        %279 = vmatprep.subr.mxu0 0.0
        %280 = vmatpush1.msra.mxu0 0.0
        %281 = vmatprep.subr.mxu0 0.0
        %282 = vmatpush1.msra.mxu0 0.0
        %283 = vmatprep.subr.mxu0 0.0
        %284 = vmatpush1.msra.mxu0 0.0
        %285 = vmatprep.subr.mxu0 0.0
        %286 = vmatpush1.msra.mxu0 0.0
        %287 = vmatprep.subr.mxu0 0.0
        %288 = vmatpush1.msra.mxu0 0.0
        %289 = vmatprep.subr.mxu0 0.0
        %290 = vmatpush1.msra.mxu0 0.0
        %291 = vmatprep.subr.mxu0 0.0
        %292 = vmatpush1.msra.mxu0 0.0
        %293 = vmatprep.subr.mxu0 0.0
        %294 = vmatpush1.msra.mxu0 0.0
        %295 = vmatprep.subr.mxu0 0.0
        %296 = vmatpush1.msra.mxu0 0.0
        %297 = vmatprep.subr.mxu0 0.0
        %298 = vmatpush1.msra.mxu0 0.0
        %299 = vmatprep.subr.mxu0 0.0
        %300 = vmatpush1.msra.mxu0 0.0
        %301 = vmatprep.subr.mxu0 0.0
        %302 = vmatpush1.msra.mxu0 0.0
        %303 = vmatprep.mubr.f32.mxu0 0.0
        %304 = vmatmul.mubr.f32.gmra.mrb[0].mxu0 %v224
        %v305 = vpop.f32.mrb[0].mxu0
        %v306 = vadd.f32 %v220, %v305
        %v307 = vpop.f32.mrb[0].mxu0
        %v308 = vadd.f32 %v220, %v307
        %309 = vdwg.mxu0
        %310 = vmatprep.subr.mxu0 %v211
        %311 = vmatpush1.msra.mxu0 %v210
        %312 = vmatprep.subr.mxu0 %v237
        %313 = vmatpush1.msra.mxu0 %v234
        %314 = vmatprep.subr.mxu0 0.0
        %315 = vmatpush1.msra.mxu0 0.0
        %316 = vmatprep.subr.mxu0 0.0
        %317 = vmatpush1.msra.mxu0 0.0
        %318 = vmatprep.subr.mxu0 0.0
        %319 = vmatpush1.msra.mxu0 0.0
        %320 = vmatprep.subr.mxu0 0.0
        %321 = vmatpush1.msra.mxu0 0.0
        %322 = vmatprep.subr.mxu0 0.0
        %323 = vmatpush1.msra.mxu0 0.0
        %324 = vmatprep.subr.mxu0 0.0
        %325 = vmatpush1.msra.mxu0 0.0
        %326 = vmatprep.subr.mxu0 0.0
        %327 = vmatpush1.msra.mxu0 0.0
        %328 = vmatprep.subr.mxu0 0.0
        %329 = vmatpush1.msra.mxu0 0.0
        %330 = vmatprep.subr.mxu0 0.0
        %331 = vmatpush1.msra.mxu0 0.0
        %332 = vmatprep.subr.mxu0 0.0
        %333 = vmatpush1.msra.mxu0 0.0
        %334 = vmatprep.subr.mxu0 0.0
        %335 = vmatpush1.msra.mxu0 0.0
        %336 = vmatprep.subr.mxu0 0.0
        %337 = vmatpush1.msra.mxu0 0.0
        %338 = vmatprep.subr.mxu0 0.0
        %339 = vmatpush1.msra.mxu0 0.0
        %340 = vmatprep.subr.mxu0 0.0
        %341 = vmatpush1.msra.mxu0 0.0
        %342 = vmatprep.subr.mxu0 0.0
        %343 = vmatpush1.msra.mxu0 0.0
        %344 = vmatprep.subr.mxu0 0.0
        %345 = vmatpush1.msra.mxu0 0.0
        %346 = vmatprep.subr.mxu0 0.0
        %347 = vmatpush1.msra.mxu0 0.0
        %348 = vmatprep.subr.mxu0 0.0
        %349 = vmatpush1.msra.mxu0 0.0
        %350 = vmatprep.subr.mxu0 0.0
        %351 = vmatpush1.msra.mxu0 0.0
        %352 = vmatprep.subr.mxu0 0.0
        %353 = vmatpush1.msra.mxu0 0.0
        %354 = vmatprep.subr.mxu0 0.0
        %355 = vmatpush1.msra.mxu0 0.0
        %356 = vmatprep.subr.mxu0 0.0
        %357 = vmatpush1.msra.mxu0 0.0
        %358 = vmatprep.subr.mxu0 0.0
        %359 = vmatpush1.msra.mxu0 0.0
        %360 = vmatprep.subr.mxu0 0.0
        %361 = vmatpush1.msra.mxu0 0.0
        %362 = vmatprep.subr.mxu0 0.0
        %363 = vmatpush1.msra.mxu0 0.0
        %364 = vmatprep.subr.mxu0 0.0
        %365 = vmatpush1.msra.mxu0 0.0
        %366 = vmatprep.subr.mxu0 0.0
        %367 = vmatpush1.msra.mxu0 0.0
        %368 = vmatprep.subr.mxu0 0.0
        %369 = vmatpush1.msra.mxu0 0.0
        %370 = vmatprep.subr.mxu0 0.0
        %371 = vmatpush1.msra.mxu0 0.0
        %372 = vmatprep.subr.mxu0 0.0
        %373 = vmatpush1.msra.mxu0 0.0
        %374 = vmatprep.mubr.f32.mxu0 0.0
        %375 = vmatmul.mubr.f32.gmra.mrb[0].mxu0 %v224
        %v376 = vpop.f32.mrb[0].mxu0
        %v377 = vadd.f32 %v220, %v376
        %v378 = vpop.f32.mrb[0].mxu0
        %v379 = vadd.f32 %v220, %v378
        %380 = vdwg.mxu0
        %381 = vst [vmem:[%s205] sm:$0xff] %v306
        %382 = vst [vmem:[%s205 + $0x8] sm:$0xff] %v308
        %383 = vst [vmem:[%s205 + $0x10] sm:$0xff] %v377
        %384 = vst [vmem:[%s205 + $0x18] sm:$0xff] %v379
        %s385 = smul.u32 4, %s14
        %p386 = scmp.lt.s32.totalorder %s385, 7
        %s387 = scalar_select %p386, %s385, 7
        %s388 = smul.addr %s387, 8
        %s389 = scalar_lea.vmem %s3, %s388
        // Predicated region
        $region56: #{mixprop_forward.5} parent=50 // pred_check
          %p390 = pneg %p100
        $region57: #{mixprop_forward.5} parent=50 // pred_check_branch
          %392 = sbr.rel (%p390) target = $region59
        $region58: #{mixprop_forward.5} parent=50 // pred_region
          %s393 = smul.u32 4, %s14
        $region59: #{mixprop_forward.5} parent=50 // pred_fallthru
          _
      $region51: #{mixprop_forward.5} parent=5 // pred_fallthru
        _
      %p394 = scmp.le.s32.totalorder 2, %s9
      // Predicated region
      $region60: #{mixprop_forward.5} parent=5 // pred_check
        %p395 = pneg %p394
      $region61: #{mixprop_forward.5} parent=5 // pred_check_branch
        %397 = sbr.rel (%p395) target = $region63
      $region62: #{mixprop_forward.5} parent=5 // pred_region
        %s398 = ssub.s32 %s9, 2
        // Predicated region
        $region64: #{mixprop_forward.5} parent=62 // pred_check
          %p399 = pneg %p106
        $region65: #{mixprop_forward.5} parent=62 // pred_check_branch
          %401 = sbr.rel (%p399) target = $region67
        $region66: #{mixprop_forward.5} parent=62 // pred_region
          %s402 = smul.u32 4, %s15
          %p403 = scmp.lt.s32.totalorder %s402, 7
          %s404 = scalar_select %p403, %s402, 7
          %s405 = smul.addr %s404, 8
          %s406 = scalar_lea.vmem %s3, %s405
        $region67: #{mixprop_forward.5} parent=62 // pred_fallthru
          _
      $region63: #{mixprop_forward.5} parent=5 // pred_fallthru
        _
    $region6: #{mixprop_forward.5} parent=1 // loop_footer
      %s13 = sadd.s32 1, %s9
    $region7: #{mixprop_forward.5} parent=1 // loop_footer_branch
      %8 = sbr.rel target = $region3
    $region8: #{mixprop_forward.5} parent=1 // loop_exit
      _

</llo_original>
